<compile_context>
chip_gen: v7x
topology: tpu7x:2x2x1
jax: 0.10.0
libtpu: 0.0.40
codegen_flags: <defaults>
</compile_context>

<pallas_src>
from functools import partial

import jax
import jax.numpy as jnp
from jax.experimental import pallas as pl
from jax.experimental.pallas import tpu as pltpu


def _round_up(x, m):
    return ((x + m - 1) // m) * m


def _choose_tiles(M, tile_m, n_batch):
    """Pick a lane tile TM (multiple of 128) and padded point count M_pad (TM | M_pad)."""
    M_pad = _round_up(M, 128)
    cap = max(128, min(_round_up(tile_m, 128), M_pad))
    # Largest multiple of 128 that divides M_pad and is <= cap (no padding beyond 128).
    tm = 128
    for k in range(cap // 128, 0, -1):
        if M_pad % (k * 128) == 0:
            tm = k * 128
            break
    # If exact division forces tiny tiles, pad up to full-cap tiles only when the
    # extra padding is small (<= 12.5%) — avoids the ~2x waste of blind pad-to-TM.
    if tm < min(512, cap):
        padded = _round_up(M_pad, cap)
        if (padded - M_pad) * 8 <= M_pad:
            tm, M_pad = cap, padded
    # v7x: make sure the grid has at least 2 steps so both TensorCores get work.
    if n_batch * (M_pad // tm) < 2 and tm % 256 == 0:
        tm //= 2
    return tm, M_pad


def _volume_decoder_kernel(benc_ref, pts_ref,
                           w1pT_ref, w2T_ref, b2_ref, w3T_ref, b3_ref,
                           out_ref, *, out_channels):
    C = out_channels
    f32 = jnp.float32

    pts = pts_ref[0]                       # (3, TM) f32
    w1 = w1pT_ref[...]                     # (H, 3) f32

    # --- Layer 1 on the VPU: K=3 would waste >97% of the MXU.  The encoding GEMM is
    #     hoisted into the wrapper and arrives as a per-batch (H, 1) bias. ---
    h = (w1[:, 0:1] * pts[0:1, :]
         + w1[:, 1:2] * pts[1:2, :]
         + w1[:, 2:3] * pts[2:3, :]
         + benc_ref[0])                    # (H, TM)
    h = jnp.maximum(h, 0.0)

    # --- Layers 2/3 on the MXU: bf16 inputs, f32 accumulation. ---
    h = jnp.dot(w2T_ref[...], h.astype(jnp.bfloat16),
                preferred_element_type=f32) + b2_ref[...]
    h = jnp.maximum(h, 0.0)
    out = jnp.dot(w3T_ref[...], h.astype(jnp.bfloat16),
                  preferred_element_type=f32) + b3_ref[...]        # (C, TM)

    # --- StandardVolumeDecoder post-activations.
    #     One shared sigmoid, full tile assembled in registers, single lane-dense store.
    pieces = [jax.nn.softplus(out[0:1, :])]                        # ch 0
    pos = 1
    sig_end = 0
    if C >= 4:
        sig_end = 4
    if C >= 7:
        sig_end = 7
    if C >= 8:
        sig_end = 8
    if C >= 11:
        sig_end = 11
    if sig_end > 1:
        sig = jax.nn.sigmoid(out[1:sig_end, :])                    # rows 1:sig_end
        pieces.append(sig[0:3, :])                                 # ch 1:4
        pos = 4
        if C >= 7:                                                 # ch 4:7 normalize(2*sig-1)
            v = 2.0 * sig[3:6, :] - 1.0
            # Explicit 3-row reduce stays on the VPU (no cross-sublane XLU reduce).
            ss = v[0:1, :] * v[0:1, :] + v[1:2, :] * v[1:2, :] + v[2:3, :] * v[2:3, :]
            inv = jax.lax.rsqrt(jnp.maximum(ss, 1e-24))            # == 1/max(||v||, 1e-12)
            pieces.append(v * inv)
            pos = 7
        if C >= 8:
            pieces.append(sig[6:7, :])                             # ch 7
            pos = 8
        if C >= 11:
            pieces.append(sig[7:10, :])                            # ch 8:11
            pos = 11
    if pos < C:
        pieces.append(out[pos:C, :])                               # remaining channels linear

    result = pieces[0] if len(pieces) == 1 else jnp.concatenate(pieces, axis=0)
    out_ref[0, :, :] = result.astype(out_ref.dtype)


def standard_volume_decoder(input_encoding, pts, params, *, out_channels,
                            tile_m=1024, viewdirs=None):
    """input_encoding: (N, D); pts: (N, Rays, Samples, 3) -> {'output': (N, Rays, Samples, C)}"""
    del viewdirs  # unused by the original module
    N, R, S, _ = pts.shape
    M = R * S
    H = params["w2"].shape[0]
    C = out_channels

    # Hoist the per-batch encoding GEMM out of the kernel: (N, H, 1) hidden bias.
    benc = (input_encoding.astype(jnp.float32) @ params["w1e"].astype(jnp.float32)
            + params["b1"].astype(jnp.float32)).reshape(N, H, 1)

    # Lane-dense layout: the point axis M sits on the 128-wide lane dimension.
    pts_t = pts.reshape(N, M, 3).astype(jnp.float32).transpose(0, 2, 1)   # (N, 3, M)

    TM, M_pad = _choose_tiles(M, tile_m, N)
    if M_pad != M:
        pts_t = jnp.pad(pts_t, ((0, 0), (0, 0), (0, M_pad - M)))

    # Transposed weights (compute w^T @ x so the point axis stays on lanes).
    # MXU weights in bf16 (f32 accumulation in-kernel); layer-1 / bias terms stay f32.
    w1pT = params["w1p"].astype(jnp.float32).T                 # (H, 3)
    w2T = params["w2"].astype(jnp.bfloat16).T                  # (H, H)
    b2 = params["b2"].astype(jnp.float32).reshape(H, 1)        # (H, 1)
    w3T = params["w3"].astype(jnp.bfloat16).T                  # (C, H)
    b3 = params["b3"].astype(jnp.float32).reshape(C, 1)        # (C, 1)

    kernel = partial(_volume_decoder_kernel, out_channels=C)
    grid = (N, M_pad // TM)

    out_t = pl.pallas_call(
        kernel,
        out_shape=jax.ShapeDtypeStruct((N, C, M_pad), jnp.float32),
        grid_spec=pltpu.PrefetchScalarGridSpec(
            num_scalar_prefetch=0,
            grid=grid,
            in_specs=[
                pl.BlockSpec((1, H, 1), lambda n, m: (n, 0, 0)),    # per-batch enc bias
                pl.BlockSpec((1, 3, TM), lambda n, m: (n, 0, m)),   # points (lane-dense)
                pl.BlockSpec((H, 3), lambda n, m: (0, 0)),          # w1^T (pts part, f32)
                pl.BlockSpec((H, H), lambda n, m: (0, 0)),          # w2^T (bf16)
                pl.BlockSpec((H, 1), lambda n, m: (0, 0)),          # b2
                pl.BlockSpec((C, H), lambda n, m: (0, 0)),          # w3^T (bf16)
                pl.BlockSpec((C, 1), lambda n, m: (0, 0)),          # b3
            ],
            out_specs=pl.BlockSpec((1, C, TM), lambda n, m: (n, 0, m)),
        ),
        compiler_params=pltpu.CompilerParams(
            dimension_semantics=("parallel", "parallel"),
            vmem_limit_bytes=32 * 1024 * 1024,
        ),
    )(benc, pts_t, w1pT, w2T, b2, w3T, b3)

    # Epilogue: single fused slice+transpose+reshape back to the module's (N,R,S,C) layout.
    # A downstream consumer that accepts channel-major (N, C, M) could skip this entirely.
    out = out_t[:, :, :M].transpose(0, 2, 1).reshape(N, R, S, C)
    return {"output": out}


def _reference(input_encoding, pts, params, out_channels):
    """Pure-JAX f32 reference of the PyTorch module (MLP template + post-activations)."""
    N, R, S, _ = pts.shape
    D = input_encoding.shape[1]
    C = out_channels
    enc_b = jnp.broadcast_to(input_encoding[:, None, None, :], (N, R, S, D))
    x = jnp.concatenate([pts, enc_b], axis=-1)
    w1 = jnp.concatenate([params["w1p"], params["w1e"]], axis=0)
    h = jax.nn.relu(x @ w1 + params["b1"][0])
    h = jax.nn.relu(h @ params["w2"] + params["b2"][0])
    out = h @ params["w3"] + params["b3"][0]
    res = out
    res = res.at[..., 0].set(jax.nn.softplus(out[..., 0]))
    v_norm = jnp.ones(out.shape[:-1] + (1,), out.dtype)
    if C >= 4:
        res = res.at[..., 1:4].set(jax.nn.sigmoid(out[..., 1:4]))
    if C >= 7:
        v = 2.0 * jax.nn.sigmoid(out[..., 4:7]) - 1.0
        v_norm = jnp.sqrt(jnp.sum(v * v, axis=-1, keepdims=True))
        res = res.at[..., 4:7].set(v / jnp.maximum(v_norm, 1e-12))
    if C >= 8:
        res = res.at[..., 7].set(jax.nn.sigmoid(out[..., 7]))
    if C >= 11:
        res = res.at[..., 8:11].set(jax.nn.sigmoid(out[..., 8:11]))
    return res, v_norm


if __name__ == "__main__":
    # Small, module-consistent shapes.
    N, RAYS, SAMPLES = 2, 8, 8
    INPUT_DIM, HIDDEN, OUT_CHANNELS = 32, 32, 11   # exercises every activation branch
    # TODO(synk): template_res (voxel-grid variant of the template) is not used by the MLP template.

    key = jax.random.PRNGKey(0)
    k_enc, k_pts, k1, k2, k3, k4, k5 = jax.random.split(key, 7)

    input_encoding = jax.random.normal(k_enc, (N, INPUT_DIM), dtype=jnp.float32)
    pts = jax.random.uniform(k_pts, (N, RAYS, SAMPLES, 3), dtype=jnp.float32,
                             minval=-1.0, maxval=1.0)

    params = {
        "w1p": 0.3 * jax.random.normal(k1, (3, HIDDEN), dtype=jnp.float32),
        "w1e": 0.1 * jax.random.normal(k2, (INPUT_DIM, HIDDEN), dtype=jnp.float32),
        "b1": jnp.zeros((1, HIDDEN), dtype=jnp.float32),
        "w2": 0.1 * jax.random.normal(k3, (HIDDEN, HIDDEN), dtype=jnp.float32),
        "b2": jnp.zeros((1, HIDDEN), dtype=jnp.float32),
        "w3": 0.2 * jax.random.normal(k4, (HIDDEN, OUT_CHANNELS), dtype=jnp.float32),
        "b3": 0.05 * jax.random.normal(k5, (1, OUT_CHANNELS), dtype=jnp.float32),
    }

    result = standard_volume_decoder(input_encoding, pts, params,
                                     out_channels=OUT_CHANNELS)
    out = jax.block_until_ready(result["output"])
    assert out.shape == (N, RAYS, SAMPLES, OUT_CHANNELS), out.shape

    ref, v_norm = _reference(input_encoding, pts, params, OUT_CHANNELS)
    err = jnp.abs(out - ref)
    # Channels 4:7 are an L2-normalized direction: when ||v|| is tiny the direction is
    # ill-conditioned and amplifies tiny rounding differences, so measure their error in
    # v-space (scaled by ||v||).  Tolerance sized for bf16 MXU inputs / f32 accumulation.
    err = err.at[..., 4:7].multiply(jnp.minimum(v_norm, 1.0))
    max_err = float(jnp.max(err))
    assert max_err < 2e-2, max_err

    print("KERNEL_OK")
</pallas_src>

<mosaic_0001>
module attributes {stable_mosaic.version = 11 : i64} {
  func.func @_volume_decoder_kernel(%arg0: i32, %arg1: i32, %arg2: memref<1x32x1xf32, #tpu.memory_space<vmem>>, %arg3: memref<1x3x128xf32, #tpu.memory_space<vmem>>, %arg4: memref<32x3xf32, #tpu.memory_space<vmem>>, %arg5: memref<32x32xbf16, #tpu.memory_space<vmem>>, %arg6: memref<32x1xf32, #tpu.memory_space<vmem>>, %arg7: memref<11x32xbf16, #tpu.memory_space<vmem>>, %arg8: memref<11x1xf32, #tpu.memory_space<vmem>>, %arg9: memref<1x11x128xf32, #tpu.memory_space<vmem>>) attributes {dimension_semantics = [#tpu.dimension_semantics<parallel>, #tpu.dimension_semantics<parallel>], iteration_bounds = array<i64: 2, 1>, scalar_prefetch = 0 : i64, scratch_operands = 0 : i64, tpu.core_type = #tpu.core_type<tc>, window_params = [{transform_indices = @transform_0, window_bounds = array<i64: 1, 32, 1>}, {transform_indices = @transform_1, window_bounds = array<i64: 1, 3, 128>}, {pipeline_mode = #tpu.pipeline_mode<synchronous>, transform_indices = @transform_2, window_bounds = array<i64: 32, 3>}, {pipeline_mode = #tpu.pipeline_mode<synchronous>, transform_indices = @transform_3, window_bounds = array<i64: 32, 32>}, {pipeline_mode = #tpu.pipeline_mode<synchronous>, transform_indices = @transform_4, window_bounds = array<i64: 32, 1>}, {pipeline_mode = #tpu.pipeline_mode<synchronous>, transform_indices = @transform_5, window_bounds = array<i64: 11, 32>}, {pipeline_mode = #tpu.pipeline_mode<synchronous>, transform_indices = @transform_6, window_bounds = array<i64: 11, 1>}, {transform_indices = @transform_7, window_bounds = array<i64: 1, 11, 128>}]} {
    %c0 = arith.constant 0 : index
    %c0_0 = arith.constant 0 : index
    %c0_1 = arith.constant 0 : index
    %0 = vector.load %arg3[%c0, %c0_0, %c0_1] : memref<1x3x128xf32, #tpu.memory_space<vmem>>, vector<1x3x128xf32>
    %1 = vector.shape_cast %0 : vector<1x3x128xf32> to vector<3x128xf32>
    %c0_2 = arith.constant 0 : index
    %c0_3 = arith.constant 0 : index
    %2 = vector.load %arg4[%c0_2, %c0_3] : memref<32x3xf32, #tpu.memory_space<vmem>>, vector<32x3xf32>
    %3 = vector.extract_strided_slice %2 {offsets = [0, 0], sizes = [32, 1], strides = [1, 1]} : vector<32x3xf32> to vector<32x1xf32>
    %4 = vector.extract_strided_slice %1 {offsets = [0, 0], sizes = [1, 128], strides = [1, 1]} : vector<3x128xf32> to vector<1x128xf32>
    %5 = vector.broadcast %3 : vector<32x1xf32> to vector<32x128xf32>
    %6 = vector.broadcast %4 : vector<1x128xf32> to vector<32x128xf32>
    %7 = arith.mulf %5, %6 : vector<32x128xf32>
    %8 = vector.extract_strided_slice %2 {offsets = [0, 1], sizes = [32, 1], strides = [1, 1]} : vector<32x3xf32> to vector<32x1xf32>
    %9 = vector.extract_strided_slice %1 {offsets = [1, 0], sizes = [1, 128], strides = [1, 1]} : vector<3x128xf32> to vector<1x128xf32>
    %10 = vector.broadcast %8 : vector<32x1xf32> to vector<32x128xf32>
    %11 = vector.broadcast %9 : vector<1x128xf32> to vector<32x128xf32>
    %12 = arith.mulf %10, %11 : vector<32x128xf32>
    %13 = arith.addf %7, %12 : vector<32x128xf32>
    %14 = vector.extract_strided_slice %2 {offsets = [0, 2], sizes = [32, 1], strides = [1, 1]} : vector<32x3xf32> to vector<32x1xf32>
    %15 = vector.extract_strided_slice %1 {offsets = [2, 0], sizes = [1, 128], strides = [1, 1]} : vector<3x128xf32> to vector<1x128xf32>
    %16 = vector.broadcast %14 : vector<32x1xf32> to vector<32x128xf32>
    %17 = vector.broadcast %15 : vector<1x128xf32> to vector<32x128xf32>
    %18 = arith.mulf %16, %17 : vector<32x128xf32>
    %19 = arith.addf %13, %18 : vector<32x128xf32>
    %c0_4 = arith.constant 0 : index
    %c0_5 = arith.constant 0 : index
    %c0_6 = arith.constant 0 : index
    %20 = vector.load %arg2[%c0_4, %c0_5, %c0_6] : memref<1x32x1xf32, #tpu.memory_space<vmem>>, vector<1x32x1xf32>
    %21 = vector.shape_cast %20 : vector<1x32x1xf32> to vector<32x1xf32>
    %22 = vector.broadcast %21 : vector<32x1xf32> to vector<32x128xf32>
    %23 = arith.addf %19, %22 : vector<32x128xf32>
    %cst = arith.constant 0.000000e+00 : f32
    %24 = vector.broadcast %cst : f32 to vector<32x128xf32>
    %25 = arith.maximumf %23, %24 : vector<32x128xf32>
    %c0_7 = arith.constant 0 : index
    %c0_8 = arith.constant 0 : index
    %26 = vector.load %arg5[%c0_7, %c0_8] : memref<32x32xbf16, #tpu.memory_space<vmem>>, vector<32x32xbf16>
    %27 = arith.truncf %25 : vector<32x128xf32> to vector<32x128xbf16>
    %cst_9 = arith.constant dense<0.000000e+00> : vector<32x128xf32>
    %28 = tpu.matmul %26, %27, %cst_9 {dimension_numbers = #tpu.dot_dimension_numbers<[1], [0], [0], [1], [0, 0, 1, 1], [], []>} : vector<32x32xbf16>, vector<32x128xbf16>, vector<32x128xf32> -> vector<32x128xf32>
    %c0_10 = arith.constant 0 : index
    %c0_11 = arith.constant 0 : index
    %29 = vector.load %arg6[%c0_10, %c0_11] : memref<32x1xf32, #tpu.memory_space<vmem>>, vector<32x1xf32>
    %30 = vector.broadcast %29 : vector<32x1xf32> to vector<32x128xf32>
    %31 = arith.addf %28, %30 : vector<32x128xf32>
    %cst_12 = arith.constant 0.000000e+00 : f32
    %32 = vector.broadcast %cst_12 : f32 to vector<32x128xf32>
    %33 = arith.maximumf %31, %32 : vector<32x128xf32>
    %c0_13 = arith.constant 0 : index
    %c0_14 = arith.constant 0 : index
    %34 = vector.load %arg7[%c0_13, %c0_14] : memref<11x32xbf16, #tpu.memory_space<vmem>>, vector<11x32xbf16>
    %35 = arith.truncf %33 : vector<32x128xf32> to vector<32x128xbf16>
    %cst_15 = arith.constant dense<0.000000e+00> : vector<11x128xf32>
    %36 = tpu.matmul %34, %35, %cst_15 {dimension_numbers = #tpu.dot_dimension_numbers<[1], [0], [0], [1], [0, 0, 1, 1], [], []>} : vector<11x32xbf16>, vector<32x128xbf16>, vector<11x128xf32> -> vector<11x128xf32>
    %c0_16 = arith.constant 0 : index
    %c0_17 = arith.constant 0 : index
    %37 = vector.load %arg8[%c0_16, %c0_17] : memref<11x1xf32, #tpu.memory_space<vmem>>, vector<11x1xf32>
    %38 = vector.broadcast %37 : vector<11x1xf32> to vector<11x128xf32>
    %39 = arith.addf %36, %38 : vector<11x128xf32>
    %40 = vector.extract_strided_slice %39 {offsets = [0, 0], sizes = [1, 128], strides = [1, 1]} : vector<11x128xf32> to vector<1x128xf32>
    %cst_18 = arith.constant 0.000000e+00 : f32
    %41 = vector.broadcast %cst_18 : f32 to vector<1x128xf32>
    %42 = arith.maximumf %40, %41 : vector<1x128xf32>
    %43 = vector.broadcast %cst_18 : f32 to vector<1x128xf32>
    %44 = arith.subf %40, %43 : vector<1x128xf32>
    %45 = arith.cmpf one, %44, %44 : vector<1x128xf32>
    %46 = vector.broadcast %cst_18 : f32 to vector<1x128xf32>
    %47 = arith.addf %40, %46 : vector<1x128xf32>
    %48 = math.absf %44 : vector<1x128xf32>
    %cst_19 = arith.constant 0.000000e+00 : f32
    %49 = vector.broadcast %cst_19 : f32 to vector<1x128xf32>
    %50 = arith.subf %49, %48 : vector<1x128xf32>
    %51 = math.exp %50 : vector<1x128xf32>
    %52 = math.log1p %51 : vector<1x128xf32>
    %53 = arith.addf %42, %52 : vector<1x128xf32>
    %54 = arith.select %45, %47, %53 : vector<1x128xi1>, vector<1x128xf32>
    %55 = vector.extract_strided_slice %39 {offsets = [1, 0], sizes = [10, 128], strides = [1, 1]} : vector<11x128xf32> to vector<10x128xf32>
    %56 = arith.negf %55 : vector<10x128xf32>
    %57 = math.exp %56 : vector<10x128xf32>
    %cst_20 = arith.constant 1.000000e+00 : f32
    %58 = vector.broadcast %cst_20 : f32 to vector<10x128xf32>
    %59 = arith.addf %58, %57 : vector<10x128xf32>
    %60 = arith.divf %58, %59 : vector<10x128xf32>
    %61 = vector.extract_strided_slice %60 {offsets = [0, 0], sizes = [3, 128], strides = [1, 1]} : vector<10x128xf32> to vector<3x128xf32>
    %62 = vector.extract_strided_slice %60 {offsets = [3, 0], sizes = [3, 128], strides = [1, 1]} : vector<10x128xf32> to vector<3x128xf32>
    %cst_21 = arith.constant 2.000000e+00 : f32
    %63 = vector.broadcast %cst_21 : f32 to vector<3x128xf32>
    %64 = arith.mulf %63, %62 : vector<3x128xf32>
    %cst_22 = arith.constant 1.000000e+00 : f32
    %65 = vector.broadcast %cst_22 : f32 to vector<3x128xf32>
    %66 = arith.subf %64, %65 : vector<3x128xf32>
    %67 = vector.extract_strided_slice %66 {offsets = [0, 0], sizes = [1, 128], strides = [1, 1]} : vector<3x128xf32> to vector<1x128xf32>
    %68 = vector.extract_strided_slice %66 {offsets = [0, 0], sizes = [1, 128], strides = [1, 1]} : vector<3x128xf32> to vector<1x128xf32>
    %69 = arith.mulf %67, %68 : vector<1x128xf32>
    %70 = vector.extract_strided_slice %66 {offsets = [1, 0], sizes = [1, 128], strides = [1, 1]} : vector<3x128xf32> to vector<1x128xf32>
    %71 = vector.extract_strided_slice %66 {offsets = [1, 0], sizes = [1, 128], strides = [1, 1]} : vector<3x128xf32> to vector<1x128xf32>
    %72 = arith.mulf %70, %71 : vector<1x128xf32>
    %73 = arith.addf %69, %72 : vector<1x128xf32>
    %74 = vector.extract_strided_slice %66 {offsets = [2, 0], sizes = [1, 128], strides = [1, 1]} : vector<3x128xf32> to vector<1x128xf32>
    %75 = vector.extract_strided_slice %66 {offsets = [2, 0], sizes = [1, 128], strides = [1, 1]} : vector<3x128xf32> to vector<1x128xf32>
    %76 = arith.mulf %74, %75 : vector<1x128xf32>
    %77 = arith.addf %73, %76 : vector<1x128xf32>
    %cst_23 = arith.constant 1.000000e-24 : f32
    %78 = vector.broadcast %cst_23 : f32 to vector<1x128xf32>
    %79 = arith.maximumf %77, %78 : vector<1x128xf32>
    %80 = math.rsqrt %79 : vector<1x128xf32>
    %81 = vector.broadcast %80 : vector<1x128xf32> to vector<3x128xf32>
    %82 = arith.mulf %66, %81 : vector<3x128xf32>
    %83 = vector.extract_strided_slice %60 {offsets = [6, 0], sizes = [1, 128], strides = [1, 1]} : vector<10x128xf32> to vector<1x128xf32>
    %84 = vector.extract_strided_slice %60 {offsets = [7, 0], sizes = [3, 128], strides = [1, 1]} : vector<10x128xf32> to vector<3x128xf32>
    %85 = tpu.concatenate %54, %61, %82, %83, %84 in 0 : vector<1x128xf32>, vector<3x128xf32>, vector<3x128xf32>, vector<1x128xf32>, vector<3x128xf32> -> vector<11x128xf32>
    %c0_24 = arith.constant 0 : index
    %c0_25 = arith.constant 0 : index
    %c0_26 = arith.constant 0 : index
    %86 = vector.load %arg9[%c0_24, %c0_25, %c0_26] : memref<1x11x128xf32, #tpu.memory_space<vmem>>, vector<1x11x128xf32>
    %87 = vector.shape_cast %86 : vector<1x11x128xf32> to vector<11x128xf32>
    %88 = vector.shape_cast %85 : vector<11x128xf32> to vector<1x11x128xf32>
    tpu.vector_store %arg9[%c0_24, %c0_25, %c0_26], %88 {strides = array<i32>} : memref<1x11x128xf32, #tpu.memory_space<vmem>>, vector<1x11x128xf32>,
    return
  }
  func.func @transform_0(%arg0: i32, %arg1: i32) -> (i32, i32, i32) {
    %c0_i32 = arith.constant 0 : i32
    %c0_i32_0 = arith.constant 0 : i32
    %c0_i32_1 = arith.constant 0 : i32
    return %arg0, %c0_i32, %c0_i32_0 : i32, i32, i32
  }
  func.func @transform_1(%arg0: i32, %arg1: i32) -> (i32, i32, i32) {
    %c0_i32 = arith.constant 0 : i32
    %c0_i32_0 = arith.constant 0 : i32
    return %arg0, %c0_i32, %arg1 : i32, i32, i32
  }
  func.func @transform_2(%arg0: i32, %arg1: i32) -> (i32, i32) {
    %c0_i32 = arith.constant 0 : i32
    %c0_i32_0 = arith.constant 0 : i32
    %c0_i32_1 = arith.constant 0 : i32
    return %c0_i32, %c0_i32_0 : i32, i32
  }
  func.func @transform_3(%arg0: i32, %arg1: i32) -> (i32, i32) {
    %c0_i32 = arith.constant 0 : i32
    %c0_i32_0 = arith.constant 0 : i32
    %c0_i32_1 = arith.constant 0 : i32
    return %c0_i32, %c0_i32_0 : i32, i32
  }
  func.func @transform_4(%arg0: i32, %arg1: i32) -> (i32, i32) {
    %c0_i32 = arith.constant 0 : i32
    %c0_i32_0 = arith.constant 0 : i32
    %c0_i32_1 = arith.constant 0 : i32
    return %c0_i32, %c0_i32_0 : i32, i32
  }
  func.func @transform_5(%arg0: i32, %arg1: i32) -> (i32, i32) {
    %c0_i32 = arith.constant 0 : i32
    %c0_i32_0 = arith.constant 0 : i32
    %c0_i32_1 = arith.constant 0 : i32
    return %c0_i32, %c0_i32_0 : i32, i32
  }
  func.func @transform_6(%arg0: i32, %arg1: i32) -> (i32, i32) {
    %c0_i32 = arith.constant 0 : i32
    %c0_i32_0 = arith.constant 0 : i32
    %c0_i32_1 = arith.constant 0 : i32
    return %c0_i32, %c0_i32_0 : i32, i32
  }
  func.func @transform_7(%arg0: i32, %arg1: i32) -> (i32, i32, i32) {
    %c0_i32 = arith.constant 0 : i32
    %c0_i32_0 = arith.constant 0 : i32
    return %arg0, %c0_i32, %arg1 : i32, i32, i32
  }
}

</mosaic_0001>

<llo_original>
// kernel: tpu_custom_call.1
$region0: #{tpu_custom_call.1}
  #allocation0 [shape = 'u32[]', space=smem, size = 0x4, offset = 0x4, fixed_abs, tag = 'smem constant byte address 0x4 - core index']
  #allocation1 [shape = 'u32[144,128]{1,0:T(1,128)}', space=vmem, size = 0x12000, scoped, tag = 'internal scratch']
  %s0 = inlined_call_operand.vmem [shape: f32[2,32,1], index: 0, kind: input, shape index: {}]
  %s1 = inlined_call_operand.vmem [shape: f32[2,3,128], index: 1, kind: input, shape index: {}]
  %s2 = inlined_call_operand.vmem [shape: f32[32,3], index: 2, kind: input, shape index: {}]
  %s3 = inlined_call_operand.vmem [shape: bf16[32,32], index: 3, kind: input, shape index: {}]
  %s4 = inlined_call_operand.vmem [shape: f32[32,1], index: 4, kind: input, shape index: {}]
  %s5 = inlined_call_operand.vmem [shape: bf16[11,32], index: 5, kind: input, shape index: {}]
  %s6 = inlined_call_operand.vmem [shape: f32[11,1], index: 6, kind: input, shape index: {}]
  %s7 = inlined_call_operand.vmem [shape: f32[2,11,128], index: 7, kind: output, shape index: {}]
  %s8 = sld [smem:[#allocation0]]
  $region61: #{tpu_custom_call.1} parent=0
    _
  %s10 = ssub.s32 1, %s8
  %s11 = scalar_select 0, %s10, %s8
  loop: start=0, step=1, limit=4
  $region2: #{tpu_custom_call.1} parent=0 // loop_pre_header
    _
  $region3: #{tpu_custom_call.1} parent=0 // loop_header
    %s13 = sphi 0, %s17
    %p14 = scmp.ge.s32.totalorder %s13, 4
    %s20 = sphi 0, %s32
    %s21 = sphi 0, %s28
    %s22 = sphi 0, %s20
    %s23 = sphi 0, %s21
    %s24 = sphi 0, %s22
    %s25 = sphi 0, %s23
    %s35 = sphi 0, %s37
    %s38 = sphi 0, %s35
    %s39 = sphi 0, %s38
    %s55 = sphi 0, %s39
    %s63 = sphi 0, %s65
    %s66 = sphi 0, %s63
    %s67 = sphi 0, %s66
    %s83 = sphi 0, %s67
    %s87 = sphi 0, %s87
    %s89 = sphi 0, %s87
    %s90 = sphi 0, %s89
    %s104 = sphi 0, %s90
    %s108 = sphi 0, %s108
    %s110 = sphi 0, %s108
    %s111 = sphi 0, %s110
    %s125 = sphi 0, %s111
    %s129 = sphi 0, %s129
    %s131 = sphi 0, %s129
    %s132 = sphi 0, %s131
    %s146 = sphi 0, %s132
    %s150 = sphi 0, %s150
    %s152 = sphi 0, %s150
    %s153 = sphi 0, %s152
    %s167 = sphi 0, %s153
    %s171 = sphi 0, %s171
    %s173 = sphi 0, %s171
    %s174 = sphi 0, %s173
    %s188 = sphi 0, %s174
    %s196 = sphi 0, %s198
    %s199 = sphi 0, %s196
    %s200 = sphi 0, %s199
    %s216 = sphi 0, %s200
  $region4: #{tpu_custom_call.1} parent=0 // loop_header_branch
    %16 = sbr.rel (%p14) target = $region8
  $region5: #{tpu_custom_call.1} parent=0 // loop_body
    %s18 = ssub.s32 %s13, 1
    %s19 = ssub.s32 %s13, 2
    %s26 = sadd.s32 1, %s21
    %p27 = scmp.ge.s32.totalorder %s26, 1
    %s28 = scalar_select %p27, 0, %s26
    %s29 = sadd.s32 1, %s20
    %s30 = scalar_select %p27, %s29, %s20
    %p31 = scmp.ge.s32.totalorder %s30, 2
    %s32 = scalar_select %p31, 0, %s30
    %s33 = ssub.s32 %s20, %s32
    %p34 = scmp.eq.s32.totalorder %s33, 0
    %s36 = sadd.s32 %s35, 1
    %s37 = scalar_select %p34, %s35, %s36
    %p40 = pneg %p34
    %p41 = scmp.eq.s32.totalorder %s13, 1
    %p42 = por %p40, %p41
    %p43 = scmp.ne.s32.totalorder %s35, %s38
    %p44 = scmp.eq.s32.totalorder %s13, 0
    %p45 = por %p43, %p44
    %p46 = scmp.ne.s32.totalorder %s35, %s38
    %p47 = scmp.eq.s32.totalorder %s18, 1
    %p48 = por %p46, %p47
    %p49 = scmp.ne.s32.totalorder %s38, %s39
    %p50 = scmp.eq.s32.totalorder %s18, 0
    %p51 = por %p49, %p50
    %p52 = scmp.ne.s32.totalorder %s38, %s39
    %p53 = scmp.eq.s32.totalorder %s19, 1
    %p54 = por %p52, %p53
    %p56 = scmp.ne.s32.totalorder %s39, %s55
    %p57 = scmp.eq.s32.totalorder %s19, 0
    %p58 = por %p56, %p57
    %s59 = ssub.s32 %s20, %s32
    %s60 = ssub.s32 %s21, %s28
    %s61 = sor.u32 %s59, %s60
    %p62 = scmp.eq.s32.totalorder %s61, 0
    %s64 = sadd.s32 %s63, 1
    %s65 = scalar_select %p62, %s63, %s64
    %p68 = pneg %p62
    %p69 = scmp.eq.s32.totalorder %s13, 1
    %p70 = por %p68, %p69
    %p71 = scmp.ne.s32.totalorder %s63, %s66
    %p72 = scmp.eq.s32.totalorder %s13, 0
    %p73 = por %p71, %p72
    %p74 = scmp.ne.s32.totalorder %s63, %s66
    %p75 = scmp.eq.s32.totalorder %s18, 1
    %p76 = por %p74, %p75
    %p77 = scmp.ne.s32.totalorder %s66, %s67
    %p78 = scmp.eq.s32.totalorder %s18, 0
    %p79 = por %p77, %p78
    %p80 = scmp.ne.s32.totalorder %s66, %s67
    %p81 = scmp.eq.s32.totalorder %s19, 1
    %p82 = por %p80, %p81
    %p84 = scmp.ne.s32.totalorder %s67, %s83
    %p85 = scmp.eq.s32.totalorder %s19, 0
    %p86 = por %p84, %p85
    %s88 = sadd.s32 %s87, 1
    %p91 = scmp.eq.s32.totalorder %s13, 1
    %p92 = scmp.ne.s32.totalorder %s87, %s89
    %p93 = scmp.eq.s32.totalorder %s13, 0
    %p94 = por %p92, %p93
    %p95 = scmp.ne.s32.totalorder %s87, %s89
    %p96 = scmp.eq.s32.totalorder %s18, 1
    %p97 = por %p95, %p96
    %p98 = scmp.ne.s32.totalorder %s89, %s90
    %p99 = scmp.eq.s32.totalorder %s18, 0
    %p100 = por %p98, %p99
    %p101 = scmp.ne.s32.totalorder %s89, %s90
    %p102 = scmp.eq.s32.totalorder %s19, 1
    %p103 = por %p101, %p102
    %p105 = scmp.ne.s32.totalorder %s90, %s104
    %p106 = scmp.eq.s32.totalorder %s19, 0
    %p107 = por %p105, %p106
    %s109 = sadd.s32 %s108, 1
    %p112 = scmp.eq.s32.totalorder %s13, 1
    %p113 = scmp.ne.s32.totalorder %s108, %s110
    %p114 = scmp.eq.s32.totalorder %s13, 0
    %p115 = por %p113, %p114
    %p116 = scmp.ne.s32.totalorder %s108, %s110
    %p117 = scmp.eq.s32.totalorder %s18, 1
    %p118 = por %p116, %p117
    %p119 = scmp.ne.s32.totalorder %s110, %s111
    %p120 = scmp.eq.s32.totalorder %s18, 0
    %p121 = por %p119, %p120
    %p122 = scmp.ne.s32.totalorder %s110, %s111
    %p123 = scmp.eq.s32.totalorder %s19, 1
    %p124 = por %p122, %p123
    %p126 = scmp.ne.s32.totalorder %s111, %s125
    %p127 = scmp.eq.s32.totalorder %s19, 0
    %p128 = por %p126, %p127
    %s130 = sadd.s32 %s129, 1
    %p133 = scmp.eq.s32.totalorder %s13, 1
    %p134 = scmp.ne.s32.totalorder %s129, %s131
    %p135 = scmp.eq.s32.totalorder %s13, 0
    %p136 = por %p134, %p135
    %p137 = scmp.ne.s32.totalorder %s129, %s131
    %p138 = scmp.eq.s32.totalorder %s18, 1
    %p139 = por %p137, %p138
    %p140 = scmp.ne.s32.totalorder %s131, %s132
    %p141 = scmp.eq.s32.totalorder %s18, 0
    %p142 = por %p140, %p141
    %p143 = scmp.ne.s32.totalorder %s131, %s132
    %p144 = scmp.eq.s32.totalorder %s19, 1
    %p145 = por %p143, %p144
    %p147 = scmp.ne.s32.totalorder %s132, %s146
    %p148 = scmp.eq.s32.totalorder %s19, 0
    %p149 = por %p147, %p148
    %s151 = sadd.s32 %s150, 1
    %p154 = scmp.eq.s32.totalorder %s13, 1
    %p155 = scmp.ne.s32.totalorder %s150, %s152
    %p156 = scmp.eq.s32.totalorder %s13, 0
    %p157 = por %p155, %p156
    %p158 = scmp.ne.s32.totalorder %s150, %s152
    %p159 = scmp.eq.s32.totalorder %s18, 1
    %p160 = por %p158, %p159
    %p161 = scmp.ne.s32.totalorder %s152, %s153
    %p162 = scmp.eq.s32.totalorder %s18, 0
    %p163 = por %p161, %p162
    %p164 = scmp.ne.s32.totalorder %s152, %s153
    %p165 = scmp.eq.s32.totalorder %s19, 1
    %p166 = por %p164, %p165
    %p168 = scmp.ne.s32.totalorder %s153, %s167
    %p169 = scmp.eq.s32.totalorder %s19, 0
    %p170 = por %p168, %p169
    %s172 = sadd.s32 %s171, 1
    %p175 = scmp.eq.s32.totalorder %s13, 1
    %p176 = scmp.ne.s32.totalorder %s171, %s173
    %p177 = scmp.eq.s32.totalorder %s13, 0
    %p178 = por %p176, %p177
    %p179 = scmp.ne.s32.totalorder %s171, %s173
    %p180 = scmp.eq.s32.totalorder %s18, 1
    %p181 = por %p179, %p180
    %p182 = scmp.ne.s32.totalorder %s173, %s174
    %p183 = scmp.eq.s32.totalorder %s18, 0
    %p184 = por %p182, %p183
    %p185 = scmp.ne.s32.totalorder %s173, %s174
    %p186 = scmp.eq.s32.totalorder %s19, 1
    %p187 = por %p185, %p186
    %p189 = scmp.ne.s32.totalorder %s174, %s188
    %p190 = scmp.eq.s32.totalorder %s19, 0
    %p191 = por %p189, %p190
    %s192 = ssub.s32 %s20, %s32
    %s193 = ssub.s32 %s21, %s28
    %s194 = sor.u32 %s192, %s193
    %p195 = scmp.eq.s32.totalorder %s194, 0
    %s197 = sadd.s32 %s196, 1
    %s198 = scalar_select %p195, %s196, %s197
    %p201 = pneg %p195
    %p202 = scmp.eq.s32.totalorder %s13, 1
    %p203 = por %p201, %p202
    %p204 = scmp.ne.s32.totalorder %s196, %s199
    %p205 = scmp.eq.s32.totalorder %s13, 0
    %p206 = por %p204, %p205
    %p207 = scmp.ne.s32.totalorder %s196, %s199
    %p208 = scmp.eq.s32.totalorder %s18, 1
    %p209 = por %p207, %p208
    %p210 = scmp.ne.s32.totalorder %s199, %s200
    %p211 = scmp.eq.s32.totalorder %s18, 0
    %p212 = por %p210, %p211
    %p213 = scmp.ne.s32.totalorder %s199, %s200
    %p214 = scmp.eq.s32.totalorder %s19, 1
    %p215 = por %p213, %p214
    %p217 = scmp.ne.s32.totalorder %s200, %s216
    %p218 = scmp.eq.s32.totalorder %s19, 0
    %p219 = por %p217, %p218
    %p220 = scmp.le.s32.totalorder 1, %s13
    %p221 = scmp.lt.s32.totalorder %s13, 3
    %p222 = pnand %p220, %p221
    %p223 = pneg %p222
    // Predicated region
    $region9: #{tpu_custom_call.1} parent=5 // pred_check
      _
    $region10: #{tpu_custom_call.1} parent=5 // pred_check_branch
      %225 = sbr.rel (%p222) target = $region12
    $region11: #{tpu_custom_call.1} parent=5 // pred_region
      %s226 = ssub.s32 %s13, 1
      // Predicated region
      $region13: #{tpu_custom_call.1} parent=11 // pred_check
        %p227 = pneg %p100
      $region14: #{tpu_custom_call.1} parent=11 // pred_check_branch
        %229 = sbr.rel (%p227) target = $region16
      $region15: #{tpu_custom_call.1} parent=11 // pred_region
        _
      $region16: #{tpu_custom_call.1} parent=11 // pred_fallthru
        _
      // Predicated region
      $region17: #{tpu_custom_call.1} parent=11 // pred_check
        %p230 = pneg %p121
      $region18: #{tpu_custom_call.1} parent=11 // pred_check_branch
        %232 = sbr.rel (%p230) target = $region20
      $region19: #{tpu_custom_call.1} parent=11 // pred_region
        _
      $region20: #{tpu_custom_call.1} parent=11 // pred_fallthru
        _
      // Predicated region
      $region21: #{tpu_custom_call.1} parent=11 // pred_check
        %p233 = pneg %p142
      $region22: #{tpu_custom_call.1} parent=11 // pred_check_branch
        %235 = sbr.rel (%p233) target = $region24
      $region23: #{tpu_custom_call.1} parent=11 // pred_region
        _
      $region24: #{tpu_custom_call.1} parent=11 // pred_fallthru
        _
      // Predicated region
      $region25: #{tpu_custom_call.1} parent=11 // pred_check
        %p236 = pneg %p163
      $region26: #{tpu_custom_call.1} parent=11 // pred_check_branch
        %238 = sbr.rel (%p236) target = $region28
      $region27: #{tpu_custom_call.1} parent=11 // pred_region
        _
      $region28: #{tpu_custom_call.1} parent=11 // pred_fallthru
        _
      // Predicated region
      $region29: #{tpu_custom_call.1} parent=11 // pred_check
        %p239 = pneg %p184
      $region30: #{tpu_custom_call.1} parent=11 // pred_check_branch
        %241 = sbr.rel (%p239) target = $region32
      $region31: #{tpu_custom_call.1} parent=11 // pred_region
        _
      $region32: #{tpu_custom_call.1} parent=11 // pred_fallthru
        _
    $region12: #{tpu_custom_call.1} parent=5 // pred_fallthru
      _
    %p242 = scmp.lt.s32.totalorder %s13, 2
    // Predicated region
    $region33: #{tpu_custom_call.1} parent=5 // pred_check
      %p243 = pneg %p242
    $region34: #{tpu_custom_call.1} parent=5 // pred_check_branch
      %245 = sbr.rel (%p243) target = $region36
    $region35: #{tpu_custom_call.1} parent=5 // pred_region
      // Predicated region
      $region37: #{tpu_custom_call.1} parent=35 // pred_check
        %p246 = pneg %p45
      $region38: #{tpu_custom_call.1} parent=35 // pred_check_branch
        %248 = sbr.rel (%p246) target = $region40
      $region39: #{tpu_custom_call.1} parent=35 // pred_region
        %p249 = scmp.lt.s32.totalorder %s20, 1
        %s250 = scalar_select %p249, %s20, 1
        %s251 = smul.addr %s250, 4
        %s252 = smul.addr %s251, 8
        %s253 = scalar_lea.vmem %s0, %s252
      $region40: #{tpu_custom_call.1} parent=35 // pred_fallthru
        _
      // Predicated region
      $region41: #{tpu_custom_call.1} parent=35 // pred_check
        %p254 = pneg %p73
      $region42: #{tpu_custom_call.1} parent=35 // pred_check_branch
        %256 = sbr.rel (%p254) target = $region44
      $region43: #{tpu_custom_call.1} parent=35 // pred_region
        %p257 = scmp.lt.s32.totalorder %s20, 1
        %s258 = scalar_select %p257, %s20, 1
        %p259 = scmp.lt.s32.totalorder %s21, 0
        %s260 = scalar_select %p259, %s21, 0
        %s261 = sadd.s32 %s260, %s258
        %s262 = smul.addr %s261, 4
        %s263 = scalar_lea.vmem %s1, %s262
      $region44: #{tpu_custom_call.1} parent=35 // pred_fallthru
        _
    $region36: #{tpu_custom_call.1} parent=5 // pred_fallthru
      _
    %p264 = scmp.le.s32.totalorder 1, %s13
    %p265 = scmp.lt.s32.totalorder %s13, 3
    %p266 = pnand %p264, %p265
    %p267 = pneg %p266
    // Predicated region
    $region45: #{tpu_custom_call.1} parent=5 // pred_check
      _
    $region46: #{tpu_custom_call.1} parent=5 // pred_check_branch
      %269 = sbr.rel (%p266) target = $region48
    $region47: #{tpu_custom_call.1} parent=5 // pred_region
      %s270 = ssub.s32 %s13, 1
      %p271 = scmp.lt.s32.totalorder %s22, 1
      %s272 = scalar_select %p271, %s22, 1
      %s273 = smul.addr %s272, 4
      %s274 = smul.addr %s273, 8
      %s275 = scalar_lea.vmem %s0, %s274
      %p276 = pneg %p51
      %p277 = pneg %p48
      %p278 = scmp.lt.s32.totalorder %s22, 1
      %s279 = scalar_select %p278, %s22, 1
      %p280 = scmp.lt.s32.totalorder %s23, 0
      %s281 = scalar_select %p280, %s23, 0
      %s282 = sadd.s32 %s281, %s279
      %s283 = smul.addr %s282, 4
      %s284 = scalar_lea.vmem %s1, %s283
      %p285 = pneg %p79
      %p286 = pneg %p76
      %p287 = pneg %p100
      %p288 = pneg %p97
      %p289 = pneg %p121
      %p290 = pneg %p118
      %p291 = pneg %p142
      %p292 = pneg %p139
      %p293 = pneg %p163
      %p294 = pneg %p160
      %p295 = pneg %p184
      %p296 = pneg %p181
      %p297 = pneg %p212
      %p298 = pneg %p209
      %p299 = scmp.lt.s32.totalorder %s22, 1
      %s300 = scalar_select %p299, %s22, 1
      %p301 = scmp.lt.s32.totalorder %s23, 0
      %s302 = scalar_select %p301, %s23, 0
      %s303 = smul.addr %s300, 2
      %s304 = sadd.s32 %s302, %s303
      %s305 = smul.addr %s304, 8
      %s306 = scalar_lea.vmem %s7, %s305
      %p307 = scmp.lt.s32.totalorder %s22, 1
      %s308 = scalar_select %p307, %s22, 1
      %s309 = smul.addr %s308, 4
      %s310 = smul.addr %s309, 8
      %s311 = scalar_lea.vmem %s0, %s310
      %p312 = scmp.lt.s32.totalorder %s22, 1
      %s313 = scalar_select %p312, %s22, 1
      %p314 = scmp.lt.s32.totalorder %s23, 0
      %s315 = scalar_select %p314, %s23, 0
      %s316 = sadd.s32 %s315, %s313
      %s317 = smul.addr %s316, 4
      %s318 = scalar_lea.vmem %s1, %s317
      %p319 = scmp.lt.s32.totalorder %s22, 1
      %s320 = scalar_select %p319, %s22, 1
      %p321 = scmp.lt.s32.totalorder %s23, 0
      %s322 = scalar_select %p321, %s23, 0
      %s323 = smul.addr %s320, 2
      %s324 = sadd.s32 %s322, %s323
      %s325 = smul.addr %s324, 8
      %s326 = scalar_lea.vmem %s7, %s325
      %v328 = vld [vmem:[%s318] sm:$0x7]
      %v329 = vld [vmem:[%s2] sm:$0xff]
      %v330 = vld [vmem:[%s2 + $0x8] sm:$0xff]
      %v331 = vld [vmem:[%s2 + $0x10] sm:$0xff]
      %v332 = vld [vmem:[%s2 + $0x18] sm:$0xff]
      %334 = vset.pattern.permute.xlu0 0
      %335 = vperm.xlu0 %334, %v329
      %v336 = vpop.permute.xlu0 %335
      %339 = vset.pattern.permute.xlu0 0
      %340 = vperm.xlu0 %339, %v330
      %v341 = vpop.permute.xlu0 %340
      %344 = vset.pattern.permute.xlu0 0
      %345 = vperm.xlu0 %344, %v331
      %v346 = vpop.permute.xlu0 %345
      %349 = vset.pattern.permute.xlu0 0
      %350 = vperm.xlu0 %349, %v332
      %v351 = vpop.permute.xlu0 %350
      %v353 = vlaneseq
      %v354 = vshrl.u32 %v353, 7
      %v355 = vsub.s32 0, %v354
      %v356 = vrot.slane %v328, %v355
      %v357 = vmul.f32 %v336, %v356
      %v358 = vmul.f32 %v341, %v356
      %v359 = vmul.f32 %v346, %v356
      %v360 = vmul.f32 %v351, %v356
      %361 = vset.pattern.permute.xlu0 1
      %362 = vperm.xlu0 %361, %v329
      %v363 = vpop.permute.xlu0 %362
      %365 = vset.pattern.permute.xlu0 1
      %366 = vperm.xlu0 %365, %v330
      %v367 = vpop.permute.xlu0 %366
      %369 = vset.pattern.permute.xlu0 1
      %370 = vperm.xlu0 %369, %v331
      %v371 = vpop.permute.xlu0 %370
      %373 = vset.pattern.permute.xlu0 1
      %374 = vperm.xlu0 %373, %v332
      %v375 = vpop.permute.xlu0 %374
      %v377 = vlaneseq
      %v378 = vshrl.u32 %v377, 7
      %v379 = vsub.s32 1, %v378
      %v380 = vrot.slane %v328, %v379
      %v381 = vmul.f32 %v363, %v380
      %v382 = vmul.f32 %v367, %v380
      %v383 = vmul.f32 %v371, %v380
      %v384 = vmul.f32 %v375, %v380
      %v385 = vadd.f32 %v357, %v381
      %v386 = vadd.f32 %v358, %v382
      %v387 = vadd.f32 %v359, %v383
      %v388 = vadd.f32 %v360, %v384
      %389 = vset.pattern.permute.xlu0 2
      %390 = vperm.xlu0 %389, %v329
      %v391 = vpop.permute.xlu0 %390
      %393 = vset.pattern.permute.xlu0 2
      %394 = vperm.xlu0 %393, %v330
      %v395 = vpop.permute.xlu0 %394
      %397 = vset.pattern.permute.xlu0 2
      %398 = vperm.xlu0 %397, %v331
      %v399 = vpop.permute.xlu0 %398
      %401 = vset.pattern.permute.xlu0 2
      %402 = vperm.xlu0 %401, %v332
      %v403 = vpop.permute.xlu0 %402
      %v405 = vlaneseq
      %v406 = vshrl.u32 %v405, 7
      %v407 = vsub.s32 2, %v406
      %v408 = vrot.slane %v328, %v407
      %v409 = vmul.f32 %v391, %v408
      %v410 = vmul.f32 %v395, %v408
      %v411 = vmul.f32 %v399, %v408
      %v412 = vmul.f32 %v403, %v408
      %v413 = vadd.f32 %v385, %v409
      %v414 = vadd.f32 %v386, %v410
      %v415 = vadd.f32 %v387, %v411
      %v416 = vadd.f32 %v388, %v412
      %v417 = vld [vmem:[%s311] sm:$0xff]
      %v418 = vld [vmem:[%s311 + $0x8] sm:$0xff]
      %v419 = vld [vmem:[%s311 + $0x10] sm:$0xff]
      %v420 = vld [vmem:[%s311 + $0x18] sm:$0xff]
      %422 = vset.pattern.permute.xlu0 0
      %423 = vperm.xlu0 %422, %v417
      %v424 = vpop.permute.xlu0 %423
      %427 = vset.pattern.permute.xlu0 0
      %428 = vperm.xlu0 %427, %v418
      %v429 = vpop.permute.xlu0 %428
      %432 = vset.pattern.permute.xlu0 0
      %433 = vperm.xlu0 %432, %v419
      %v434 = vpop.permute.xlu0 %433
      %437 = vset.pattern.permute.xlu0 0
      %438 = vperm.xlu0 %437, %v420
      %v439 = vpop.permute.xlu0 %438
      %v441 = vadd.f32 %v413, %v424
      %v442 = vadd.f32 %v414, %v429
      %v443 = vadd.f32 %v415, %v434
      %v444 = vadd.f32 %v416, %v439
      %v445 = vmax.f32 %v441, 0.0
      %v446 = vmax.f32 %v442, 0.0
      %v447 = vmax.f32 %v443, 0.0
      %v448 = vmax.f32 %v444, 0.0
      %v449 = vld [vmem:[%s3] sm:$0xf]
      %v450 = vld [vmem:[%s3 + $0x4] sm:$0xf]
      %v451 = vld [vmem:[%s3 + $0x8] sm:$0xf]
      %v452 = vld [vmem:[%s3 + $0xc] sm:$0xf]
      %v453 = vpack.c.bf16 %v446, %v445
      %v454 = vpack.c.bf16 %v448, %v447
      %v455 = vld [vmem:[%s4] sm:$0xff]
      %v456 = vld [vmem:[%s4 + $0x8] sm:$0xff]
      %v457 = vld [vmem:[%s4 + $0x10] sm:$0xff]
      %v458 = vld [vmem:[%s4 + $0x18] sm:$0xff]
      %460 = vset.pattern.permute.xlu0 0
      %461 = vperm.xlu0 %460, %v455
      %v462 = vpop.permute.xlu0 %461
      %465 = vset.pattern.permute.xlu0 0
      %466 = vperm.xlu0 %465, %v456
      %v467 = vpop.permute.xlu0 %466
      %470 = vset.pattern.permute.xlu0 0
      %471 = vperm.xlu0 %470, %v457
      %v472 = vpop.permute.xlu0 %471
      %475 = vset.pattern.permute.xlu0 0
      %476 = vperm.xlu0 %475, %v458
      %v477 = vpop.permute.xlu0 %476
      %v483 = vunpack.c.l.b16 %v449
      %v484 = vunpack.c.l.b16 %v450
      %v485 = vunpack.c.l.b16 %v451
      %v486 = vunpack.c.l.b16 %v452
      %v487 = vpack.c.b16 %v484, %v483
      %v488 = vpack.c.b16 %v486, %v485
      %vm489 = vcmask 261120
      %v491 = vsel %vm489, %v487, 0
      %v494 = vsel %vm489, %v488, 0
      %496 = vmatprep.subr.bf16.mxu0 0
      %497 = vmatpush1.bf16.msra.mxu0 %v453
      %498 = vmatprep.subr.bf16.mxu0 0
      %499 = vmatpush1.bf16.msra.mxu0 %v454
      %500 = vmatprep.subr.bf16.mxu0 0
      %501 = vmatpush1.bf16.msra.mxu0 0
      %502 = vmatprep.subr.bf16.mxu0 0
      %503 = vmatpush1.bf16.msra.mxu0 0
      %504 = vmatprep.subr.bf16.mxu0 0
      %505 = vmatpush1.bf16.msra.mxu0 0
      %506 = vmatprep.subr.bf16.mxu0 0
      %507 = vmatpush1.bf16.msra.mxu0 0
      %508 = vmatprep.subr.bf16.mxu0 0
      %509 = vmatpush1.bf16.msra.mxu0 0
      %510 = vmatprep.subr.bf16.mxu0 0
      %511 = vmatpush1.bf16.msra.mxu0 0
      %512 = vmatprep.subr.bf16.mxu0 0
      %513 = vmatpush1.bf16.msra.mxu0 0
      %514 = vmatprep.subr.bf16.mxu0 0
      %515 = vmatpush1.bf16.msra.mxu0 0
      %516 = vmatprep.subr.bf16.mxu0 0
      %517 = vmatpush1.bf16.msra.mxu0 0
      %518 = vmatprep.subr.bf16.mxu0 0
      %519 = vmatpush1.bf16.msra.mxu0 0
      %520 = vmatprep.subr.bf16.mxu0 0
      %521 = vmatpush1.bf16.msra.mxu0 0
      %522 = vmatprep.subr.bf16.mxu0 0
      %523 = vmatpush1.bf16.msra.mxu0 0
      %524 = vmatprep.subr.bf16.mxu0 0
      %525 = vmatpush1.bf16.msra.mxu0 0
      %526 = vmatprep.subr.bf16.mxu0 0
      %527 = vmatpush1.bf16.msra.mxu0 0
      %528 = vmatprep.mubr.bf16.mxu0 0
      %529 = vmatmul.mubr.bf16.gmra.mrb[0].mxu0 %v491
      %v530 = vpop.f32.mrb[0].mxu0
      %v531 = vadd.f32 %v462, %v530
      %v532 = vpop.f32.mrb[0].mxu0
      %v533 = vpop.f32.mrb[0].mxu0
      %v534 = vadd.f32 %v467, %v533
      %v535 = vpop.f32.mrb[0].mxu0
      %536 = vmatprep.mubr.bf16.mxu0 0
      %537 = vmatmul.mubr.bf16.gmra.mrb[0].mxu0 %v494
      %v538 = vpop.f32.mrb[0].mxu0
      %v539 = vadd.f32 %v472, %v538
      %v540 = vpop.f32.mrb[0].mxu0
      %v541 = vpop.f32.mrb[0].mxu0
      %v542 = vadd.f32 %v477, %v541
      %v543 = vpop.f32.mrb[0].mxu0
      %544 = vdwg.mxu0
      %v545 = vmax.f32 %v531, 0.0
      %v546 = vmax.f32 %v534, 0.0
      %v547 = vmax.f32 %v539, 0.0
      %v548 = vmax.f32 %v542, 0.0
      %v549 = vld [vmem:[%s5] sm:$0xf]
      %v550 = vld [vmem:[%s5 + $0x4] sm:$0x3]
      %v551 = vpack.c.bf16 %v546, %v545
      %v552 = vpack.c.bf16 %v548, %v547
      %v553 = vld [vmem:[%s6] sm:$0xff]
      %v554 = vld [vmem:[%s6 + $0x8] sm:$0x7]
      %556 = vset.pattern.permute.xlu0 0
      %557 = vperm.xlu0 %556, %v553
      %v558 = vpop.permute.xlu0 %557
      %561 = vset.pattern.permute.xlu0 0
      %562 = vperm.xlu0 %561, %v554
      %v563 = vpop.permute.xlu0 %562
      %v567 = vunpack.c.l.b16 %v549
      %v568 = vunpack.c.l.b16 %v550
      %v569 = vpack.c.b16 %v568, %v567
      %v571 = vsel %vm489, %v569, 0
      %573 = vmatprep.subr.bf16.mxu0 0
      %574 = vmatpush1.bf16.msra.mxu0 %v551
      %575 = vmatprep.subr.bf16.mxu0 0
      %576 = vmatpush1.bf16.msra.mxu0 %v552
      %577 = vmatprep.subr.bf16.mxu0 0
      %578 = vmatpush1.bf16.msra.mxu0 0
      %579 = vmatprep.subr.bf16.mxu0 0
      %580 = vmatpush1.bf16.msra.mxu0 0
      %581 = vmatprep.subr.bf16.mxu0 0
      %582 = vmatpush1.bf16.msra.mxu0 0
      %583 = vmatprep.subr.bf16.mxu0 0
      %584 = vmatpush1.bf16.msra.mxu0 0
      %585 = vmatprep.subr.bf16.mxu0 0
      %586 = vmatpush1.bf16.msra.mxu0 0
      %587 = vmatprep.subr.bf16.mxu0 0
      %588 = vmatpush1.bf16.msra.mxu0 0
      %589 = vmatprep.subr.bf16.mxu0 0
      %590 = vmatpush1.bf16.msra.mxu0 0
      %591 = vmatprep.subr.bf16.mxu0 0
      %592 = vmatpush1.bf16.msra.mxu0 0
      %593 = vmatprep.subr.bf16.mxu0 0
      %594 = vmatpush1.bf16.msra.mxu0 0
      %595 = vmatprep.subr.bf16.mxu0 0
      %596 = vmatpush1.bf16.msra.mxu0 0
      %597 = vmatprep.subr.bf16.mxu0 0
      %598 = vmatpush1.bf16.msra.mxu0 0
      %599 = vmatprep.subr.bf16.mxu0 0
      %600 = vmatpush1.bf16.msra.mxu0 0
      %601 = vmatprep.subr.bf16.mxu0 0
      %602 = vmatpush1.bf16.msra.mxu0 0
      %603 = vmatprep.subr.bf16.mxu0 0
      %604 = vmatpush1.bf16.msra.mxu0 0
      %605 = vmatprep.mubr.bf16.mxu0 0
      %606 = vmatmul.mubr.bf16.gmra.mrb[0].mxu0 %v571
      %v607 = vpop.f32.mrb[0].mxu0
      %v608 = vadd.f32 %v558, %v607
      %v609 = vpop.f32.mrb[0].mxu0
      %v610 = vpop.f32.mrb[0].mxu0
      %v611 = vadd.f32 %v563, %v610
      %v612 = vpop.f32.mrb[0].mxu0
      %613 = vdwg.mxu0
      %v614 = vmax.f32 %v608, 0.0
      %vm615 = vcmp.ne.f32.partialorder %v608, %v608
      %v616 = vadd.f32 %v608, 0.0
      %v617 = vand.u32 2147483647, %v608
      %v618 = vsub.f32 0.0, %v617
      %v619 = vmul.f32 %v618, 1.442695
      %v620 = vpow.pop %v619
      %v621 = vadd.f32 %v620, 1.0
      %v622 = vlog2.pop %v621
      %v623 = vmul.f32 %v622, 0.6931472
      %v624 = vmul.f32 -0.5, %v620
      %v625 = vadd.f32 %v624, 1.0
      %v626 = vmul.f32 %v625, %v620
      %v627 = vand.u32 2147483647, %v620
      %vm628 = vcmp.lt.f32.partialorder %v627, 0.0004427343
      %v629 = vsel %vm628, %v626, %v623
      %v630 = vadd.f32 %v614, %v629
      %v631 = vsel %vm615, %v616, %v630
      %v632 = vxor.u32 %v608, 2147483648
      %v633 = vxor.u32 %v611, 2147483648
      %v634 = vmul.f32 %v632, 1.442695
      %v635 = vpow.pop %v634
      %v636 = vmul.f32 %v633, 1.442695
      %v637 = vpow.pop %v636
      %v638 = vadd.f32 %v635, 1.0
      %v639 = vadd.f32 %v637, 1.0
      %v640 = vrcp.pop %v638
      %v641 = vmul.f32 1.0, %v640
      %v642 = vrcp.pop %v639
      %v643 = vmul.f32 1.0, %v642
      %v644 = vmul.f32 %v641, 2.0
      %v645 = vsub.f32 %v644, 1.0
      %v646 = vmul.f32 %v645, %v645
      %v648 = vrot.slane %v646, 1
      %v650 = vadd.f32 %v646, %v648
      %v651 = vrot.slane %v646, 2
      %v653 = vadd.f32 %v650, %v651
      %v654 = vmax.f32 %v653, 1e-24
      %v655 = vrsqrt.pop %v654
      %v656 = vlaneseq
      %v657 = vshrl.u32 %v656, 7
      %v658 = vsub.s32 4, %v657
      %v659 = vrot.slane %v655, %v658
      %v660 = vmul.f32 %v645, %v659
      %vm661 = vcmask 1040384
      %v662 = vsel %vm661, %v631, %v641
      %vm663 = vcmask 1043456
      %v664 = vsel %vm663, %v662, %v660
      %vm665 = vcmask 1046528
      %v666 = vsel %vm665, %v664, %v641
      %667 = vst [vmem:[%s326] sm:$0xff] %v666
      %668 = vst [vmem:[%s326 + $0x8] sm:$0x7] %v643
      %p669 = scmp.lt.s32.totalorder %s22, 1
      %s670 = scalar_select %p669, %s22, 1
      %p671 = scmp.lt.s32.totalorder %s23, 0
      %s672 = scalar_select %p671, %s23, 0
      %s673 = smul.addr %s670, 2
      %s674 = sadd.s32 %s672, %s673
      %s675 = smul.addr %s674, 8
      %s676 = scalar_lea.vmem %s7, %s675
      // Predicated region
      $region49: #{tpu_custom_call.1} parent=47 // pred_check
        %p677 = pneg %p209
      $region50: #{tpu_custom_call.1} parent=47 // pred_check_branch
        %679 = sbr.rel (%p677) target = $region52
      $region51: #{tpu_custom_call.1} parent=47 // pred_region
        _
      $region52: #{tpu_custom_call.1} parent=47 // pred_fallthru
        _
    $region48: #{tpu_custom_call.1} parent=5 // pred_fallthru
      _
    %p680 = scmp.le.s32.totalorder 2, %s13
    // Predicated region
    $region53: #{tpu_custom_call.1} parent=5 // pred_check
      %p681 = pneg %p680
    $region54: #{tpu_custom_call.1} parent=5 // pred_check_branch
      %683 = sbr.rel (%p681) target = $region56
    $region55: #{tpu_custom_call.1} parent=5 // pred_region
      %s684 = ssub.s32 %s13, 2
      // Predicated region
      $region57: #{tpu_custom_call.1} parent=55 // pred_check
        %p685 = pneg %p215
      $region58: #{tpu_custom_call.1} parent=55 // pred_check_branch
        %687 = sbr.rel (%p685) target = $region60
      $region59: #{tpu_custom_call.1} parent=55 // pred_region
        %p688 = scmp.lt.s32.totalorder %s24, 1
        %s689 = scalar_select %p688, %s24, 1
        %p690 = scmp.lt.s32.totalorder %s25, 0
        %s691 = scalar_select %p690, %s25, 0
        %s692 = smul.addr %s689, 2
        %s693 = sadd.s32 %s691, %s692
        %s694 = smul.addr %s693, 8
        %s695 = scalar_lea.vmem %s7, %s694
      $region60: #{tpu_custom_call.1} parent=55 // pred_fallthru
        _
    $region56: #{tpu_custom_call.1} parent=5 // pred_fallthru
      _
  $region6: #{tpu_custom_call.1} parent=0 // loop_footer
    %s17 = sadd.s32 1, %s13
  $region7: #{tpu_custom_call.1} parent=0 // loop_footer_branch
    %12 = sbr.rel target = $region3
  $region8: #{tpu_custom_call.1} parent=0 // loop_exit
    _

</llo_original>
